<compile_context>
chip_gen: v7x
topology: tpu7x:2x2x1
jax: 0.10.0
libtpu: 0.0.40
codegen_flags: <defaults>
</compile_context>

<pallas_src>
import jax
import jax.numpy as jnp
from jax.experimental import pallas as pl
from jax.experimental.pallas import tpu as pltpu


def _gather_onehot_kernel(ids_ref, table_ref, out_ref):
    # ids_ref:   (1, T, 1) int32  -- the T token ids for this grid step
    # table_ref: (V, E)            -- full embedding table, VMEM-resident
    # out_ref:   (T, E)            -- gathered rows
    T, _ = out_ref.shape
    V = table_ref.shape[0]
    ids_col = ids_ref[0]                                          # (T, 1)
    iota_v = jax.lax.broadcasted_iota(jnp.int32, (T, V), 1)       # (T, V)
    one_hot = (ids_col == iota_v).astype(table_ref.dtype)         # (T, V)
    out_ref[...] = jnp.dot(
        one_hot, table_ref[...], preferred_element_type=jnp.float32
    ).astype(out_ref.dtype)


def var_embedding_lookup(table, data, *, tokens_per_block=128):
    """Pallas equivalent of VarEmbedding.lookup(data) given table = word_representer()."""
    V, E = table.shape
    orig_shape = data.shape
    flat_ids = jnp.clip(data.reshape(-1).astype(jnp.int32), 0, V - 1)
    n_tokens = flat_ids.shape[0]

    # Large-table guard: keep the resident-table path only while it comfortably fits VMEM.
    table_bytes = V * E * jnp.dtype(table.dtype).itemsize
    if table_bytes > 16 * 1024 * 1024:
        # TODO(synk): for huge V*E, tile over E with a resident (V, E_tile) slab per E-step
        # (and halve the slab budget on v7x's 64 MiB VMEM) instead of falling back.
        return jnp.take(table, flat_ids, axis=0).reshape(*orig_shape, E)

    T = tokens_per_block
    n_pad = (-n_tokens) % T
    ids_padded = jnp.pad(flat_ids, (0, n_pad))            # padded slots read row 0, sliced off
    n_blocks = ids_padded.shape[0] // T
    ids3d = ids_padded.reshape(n_blocks, T, 1)

    out_padded = pl.pallas_call(
        _gather_onehot_kernel,
        out_shape=jax.ShapeDtypeStruct((n_blocks * T, E), table.dtype),
        grid_spec=pltpu.PrefetchScalarGridSpec(
            num_scalar_prefetch=0,
            grid=(n_blocks,),
            in_specs=[
                # ids tile for this block of T tokens
                pl.BlockSpec((1, T, 1), lambda i: (i, 0, 0)),
                # full table, same block every step -> VMEM-resident, fetched once
                pl.BlockSpec((V, E), lambda i: (0, 0)),
            ],
            out_specs=pl.BlockSpec((T, E), lambda i: (i, 0)),
        ),
        compiler_params=pltpu.CompilerParams(
            dimension_semantics=("parallel",)),
    )(ids3d, table)

    out_flat = out_padded[:n_tokens]
    # Matches torch .view(batch_size, seq_len, embedding_size) / passthrough for other ranks.
    return out_flat.reshape(*orig_shape, E)


if __name__ == "__main__":
    key = jax.random.PRNGKey(0)
    k_tab, k_ids = jax.random.split(key)

    V, E = 16, 128          # vocab size, embedding size (word_representer output shape)
    B, S = 2, 8             # batch, sequence length

    # Deterministic synthetic "word_representer()" output (no checkpoint load).
    table = jax.random.normal(k_tab, (V, E), dtype=jnp.float32)
    data = jax.random.randint(k_ids, (B, S), minval=0, maxval=V, dtype=jnp.int32)

    # 2-D (batch, seq) path
    out = var_embedding_lookup(table, data)
    out = jax.block_until_ready(out)
    ref = jnp.take(table, data.reshape(-1), axis=0).reshape(B, S, E)
    assert out.shape == (B, S, E), out.shape
    assert out.dtype == table.dtype, out.dtype
    assert bool(jnp.allclose(out, ref)), "mismatch vs reference gather (2-D ids)"

    # 1-D ids path (the module's `else` branch)
    data1d = data.reshape(-1)
    out1d = jax.block_until_ready(var_embedding_lookup(table, data1d))
    ref1d = jnp.take(table, data1d, axis=0)
    assert out1d.shape == (B * S, E), out1d.shape
    assert bool(jnp.allclose(out1d, ref1d)), "mismatch vs reference gather (1-D ids)"

    print("KERNEL_OK")
</pallas_src>

<mosaic_0001>
module attributes {stable_mosaic.version = 11 : i64} {
  func.func @_gather_onehot_kernel(%arg0: i32, %arg1: memref<1x128x1xi32, #tpu.memory_space<vmem>>, %arg2: memref<16x128xf32, #tpu.memory_space<vmem>>, %arg3: memref<128x128xf32, #tpu.memory_space<vmem>>) attributes {dimension_semantics = [#tpu.dimension_semantics<parallel>], iteration_bounds = array<i64: 1>, scalar_prefetch = 0 : i64, scratch_operands = 0 : i64, tpu.core_type = #tpu.core_type<tc>, window_params = [{transform_indices = @transform_0, window_bounds = array<i64: 1, 128, 1>}, {pipeline_mode = #tpu.pipeline_mode<synchronous>, transform_indices = @transform_1, window_bounds = array<i64: 16, 128>}, {transform_indices = @transform_2, window_bounds = array<i64: 128, 128>}]} {
    %c0 = arith.constant 0 : index
    %c0_0 = arith.constant 0 : index
    %c0_1 = arith.constant 0 : index
    %0 = vector.load %arg1[%c0, %c0_0, %c0_1] : memref<1x128x1xi32, #tpu.memory_space<vmem>>, vector<1x128x1xi32>
    %1 = vector.shape_cast %0 : vector<1x128x1xi32> to vector<128x1xi32>
    %2 = tpu.iota {dimensions = array<i32: 1>} : vector<128x16xi32>
    %3 = vector.broadcast %1 : vector<128x1xi32> to vector<128x16xi32>
    %4 = arith.cmpi eq, %3, %2 : vector<128x16xi32>
    %5 = arith.extui %4 : vector<128x16xi1> to vector<128x16xi32>
    %6 = arith.sitofp %5 : vector<128x16xi32> to vector<128x16xf32>
    %c0_2 = arith.constant 0 : index
    %c0_3 = arith.constant 0 : index
    %7 = vector.load %arg2[%c0_2, %c0_3] : memref<16x128xf32, #tpu.memory_space<vmem>>, vector<16x128xf32>
    %cst = arith.constant dense<0.000000e+00> : vector<128x128xf32>
    %8 = tpu.matmul %6, %7, %cst {dimension_numbers = #tpu.dot_dimension_numbers<[1], [0], [0], [1], [0, 0, 1, 1], [], []>} : vector<128x16xf32>, vector<16x128xf32>, vector<128x128xf32> -> vector<128x128xf32>
    %c0_4 = arith.constant 0 : index
    %c0_5 = arith.constant 0 : index
    %9 = vector.load %arg3[%c0_4, %c0_5] : memref<128x128xf32, #tpu.memory_space<vmem>>, vector<128x128xf32>
    tpu.vector_store %arg3[%c0_4, %c0_5], %8 {strides = array<i32>} : memref<128x128xf32, #tpu.memory_space<vmem>>, vector<128x128xf32>,
    return
  }
  func.func @transform_0(%arg0: i32) -> (i32, i32, i32) {
    %c0_i32 = arith.constant 0 : i32
    %c0_i32_0 = arith.constant 0 : i32
    %c0_i32_1 = arith.constant 0 : i32
    return %arg0, %c0_i32, %c0_i32_0 : i32, i32, i32
  }
  func.func @transform_1(%arg0: i32) -> (i32, i32) {
    %c0_i32 = arith.constant 0 : i32
    %c0_i32_0 = arith.constant 0 : i32
    %c0_i32_1 = arith.constant 0 : i32
    return %c0_i32, %c0_i32_0 : i32, i32
  }
  func.func @transform_2(%arg0: i32) -> (i32, i32) {
    %c0_i32 = arith.constant 0 : i32
    %c0_i32_0 = arith.constant 0 : i32
    return %arg0, %c0_i32 : i32, i32
  }
}

</mosaic_0001>

<llo_original>
// kernel: tpu_custom_call.1
$region0: #{tpu_custom_call.1}
  #allocation0 [shape = 'u32[]', space=smem, size = 0x4, offset = 0x4, fixed_abs, tag = 'smem constant byte address 0x4 - core index']
  #allocation1 [shape = 'u32[144,128]{1,0:T(1,128)}', space=vmem, size = 0x12000, scoped, tag = 'internal scratch']
  %s0 = inlined_call_operand.vmem [shape: s32[1,128,1], index: 0, kind: input, shape index: {}]
  %s1 = inlined_call_operand.vmem [shape: f32[16,128], index: 1, kind: input, shape index: {}]
  %s2 = inlined_call_operand.hbm [shape: f32[128,128], index: 2, kind: output, shape index: {}]
  %s3 = sld [smem:[#allocation0]]
  $region18: #{tpu_custom_call.1} parent=0
    _
  %s5 = ssub.s32 1, %s3
  %s6 = scalar_select 0, %s5, %s3
  $region1: #{tpu_custom_call.1} parent=0
    #allocation2 [shape = 'u8[65536]{0}', space=vmem, size = 0x10000, scoped, tag = 'output window, operand 0, single buffered']
    #allocation3 [shape = 's32[1]{0}', space=sflag, size = 0x4, scoped, tag = 'scoped memory for tpu_custom_call.1']
    %7 = vsyncpa [#allocation3], 0
    // Predicated region
    $region2: #{tpu_custom_call.1} parent=1 // pred_check
      _
    $region3: #{tpu_custom_call.1} parent=1 // pred_check_branch
      %9 = sbr.rel (0) target = $region5
    $region4: #{tpu_custom_call.1} parent=1 // pred_region
      _
    $region5: #{tpu_custom_call.1} parent=1 // pred_fallthru
      _
    // Predicated region
    $region6: #{tpu_custom_call.1} parent=1 // pred_check
      _
    $region7: #{tpu_custom_call.1} parent=1 // pred_check_branch
      %11 = sbr.rel (0) target = $region9
    $region8: #{tpu_custom_call.1} parent=1 // pred_region
      _
    $region9: #{tpu_custom_call.1} parent=1 // pred_fallthru
      _
    %v12 = vld [vmem:[%s0] sm:$0xff]
    %v13 = vld [vmem:[%s0 + $0x8] sm:$0xff]
    %v14 = vld [vmem:[%s0 + $0x10] sm:$0xff]
    %v15 = vld [vmem:[%s0 + $0x18] sm:$0xff]
    %v16 = vld [vmem:[%s0 + $0x20] sm:$0xff]
    %v17 = vld [vmem:[%s0 + $0x28] sm:$0xff]
    %v18 = vld [vmem:[%s0 + $0x30] sm:$0xff]
    %v19 = vld [vmem:[%s0 + $0x38] sm:$0xff]
    %v20 = vld [vmem:[%s0 + $0x40] sm:$0xff]
    %v21 = vld [vmem:[%s0 + $0x48] sm:$0xff]
    %v22 = vld [vmem:[%s0 + $0x50] sm:$0xff]
    %v23 = vld [vmem:[%s0 + $0x58] sm:$0xff]
    %v24 = vld [vmem:[%s0 + $0x60] sm:$0xff]
    %v25 = vld [vmem:[%s0 + $0x68] sm:$0xff]
    %v26 = vld [vmem:[%s0 + $0x70] sm:$0xff]
    %v27 = vld [vmem:[%s0 + $0x78] sm:$0xff]
    %v28 = vlaneseq
    %v29 = vand.u32 %v28, 127
    %30 = vset.pattern.permute.xlu0 0
    %31 = vperm.xlu0 %30, %v12
    %v32 = vpop.permute.xlu0 %31
    %33 = vset.pattern.permute.xlu0 0
    %34 = vperm.xlu0 %33, %v13
    %v35 = vpop.permute.xlu0 %34
    %36 = vset.pattern.permute.xlu0 0
    %37 = vperm.xlu0 %36, %v14
    %v38 = vpop.permute.xlu0 %37
    %39 = vset.pattern.permute.xlu0 0
    %40 = vperm.xlu0 %39, %v15
    %v41 = vpop.permute.xlu0 %40
    %42 = vset.pattern.permute.xlu0 0
    %43 = vperm.xlu0 %42, %v16
    %v44 = vpop.permute.xlu0 %43
    %45 = vset.pattern.permute.xlu0 0
    %46 = vperm.xlu0 %45, %v17
    %v47 = vpop.permute.xlu0 %46
    %48 = vset.pattern.permute.xlu0 0
    %49 = vperm.xlu0 %48, %v18
    %v50 = vpop.permute.xlu0 %49
    %51 = vset.pattern.permute.xlu0 0
    %52 = vperm.xlu0 %51, %v19
    %v53 = vpop.permute.xlu0 %52
    %54 = vset.pattern.permute.xlu0 0
    %55 = vperm.xlu0 %54, %v20
    %v56 = vpop.permute.xlu0 %55
    %57 = vset.pattern.permute.xlu0 0
    %58 = vperm.xlu0 %57, %v21
    %v59 = vpop.permute.xlu0 %58
    %60 = vset.pattern.permute.xlu0 0
    %61 = vperm.xlu0 %60, %v22
    %v62 = vpop.permute.xlu0 %61
    %63 = vset.pattern.permute.xlu0 0
    %64 = vperm.xlu0 %63, %v23
    %v65 = vpop.permute.xlu0 %64
    %66 = vset.pattern.permute.xlu0 0
    %67 = vperm.xlu0 %66, %v24
    %v68 = vpop.permute.xlu0 %67
    %69 = vset.pattern.permute.xlu0 0
    %70 = vperm.xlu0 %69, %v25
    %v71 = vpop.permute.xlu0 %70
    %72 = vset.pattern.permute.xlu0 0
    %73 = vperm.xlu0 %72, %v26
    %v74 = vpop.permute.xlu0 %73
    %75 = vset.pattern.permute.xlu0 0
    %76 = vperm.xlu0 %75, %v27
    %v77 = vpop.permute.xlu0 %76
    %vm78 = vcmp.eq.s32.totalorder %v32, %v29
    %vm79 = vcmp.eq.s32.totalorder %v35, %v29
    %vm80 = vcmp.eq.s32.totalorder %v38, %v29
    %vm81 = vcmp.eq.s32.totalorder %v41, %v29
    %vm82 = vcmp.eq.s32.totalorder %v44, %v29
    %vm83 = vcmp.eq.s32.totalorder %v47, %v29
    %vm84 = vcmp.eq.s32.totalorder %v50, %v29
    %vm85 = vcmp.eq.s32.totalorder %v53, %v29
    %vm86 = vcmp.eq.s32.totalorder %v56, %v29
    %vm87 = vcmp.eq.s32.totalorder %v59, %v29
    %vm88 = vcmp.eq.s32.totalorder %v62, %v29
    %vm89 = vcmp.eq.s32.totalorder %v65, %v29
    %vm90 = vcmp.eq.s32.totalorder %v68, %v29
    %vm91 = vcmp.eq.s32.totalorder %v71, %v29
    %vm92 = vcmp.eq.s32.totalorder %v74, %v29
    %vm93 = vcmp.eq.s32.totalorder %v77, %v29
    %v94 = vsel %vm78, 1, 0
    %v95 = vsel %vm79, 1, 0
    %v96 = vsel %vm80, 1, 0
    %v97 = vsel %vm81, 1, 0
    %v98 = vsel %vm82, 1, 0
    %v99 = vsel %vm83, 1, 0
    %v100 = vsel %vm84, 1, 0
    %v101 = vsel %vm85, 1, 0
    %v102 = vsel %vm86, 1, 0
    %v103 = vsel %vm87, 1, 0
    %v104 = vsel %vm88, 1, 0
    %v105 = vsel %vm89, 1, 0
    %v106 = vsel %vm90, 1, 0
    %v107 = vsel %vm91, 1, 0
    %v108 = vsel %vm92, 1, 0
    %v109 = vsel %vm93, 1, 0
    %v110 = vcvt.s32.f32 %v94
    %v111 = vcvt.s32.f32 %v95
    %v112 = vcvt.s32.f32 %v96
    %v113 = vcvt.s32.f32 %v97
    %v114 = vcvt.s32.f32 %v98
    %v115 = vcvt.s32.f32 %v99
    %v116 = vcvt.s32.f32 %v100
    %v117 = vcvt.s32.f32 %v101
    %v118 = vcvt.s32.f32 %v102
    %v119 = vcvt.s32.f32 %v103
    %v120 = vcvt.s32.f32 %v104
    %v121 = vcvt.s32.f32 %v105
    %v122 = vcvt.s32.f32 %v106
    %v123 = vcvt.s32.f32 %v107
    %v124 = vcvt.s32.f32 %v108
    %v125 = vcvt.s32.f32 %v109
    %v126 = vld [vmem:[%s1] sm:$0xff]
    %v127 = vld [vmem:[%s1 + $0x8] sm:$0xff]
    %vm128 = vcmask 130048
    %v130 = vsel %vm128, %v110, 0
    %v133 = vsel %vm128, %v111, 0
    %v136 = vsel %vm128, %v112, 0
    %v139 = vsel %vm128, %v113, 0
    %v142 = vsel %vm128, %v114, 0
    %v145 = vsel %vm128, %v115, 0
    %v148 = vsel %vm128, %v116, 0
    %v151 = vsel %vm128, %v117, 0
    %v154 = vsel %vm128, %v118, 0
    %v157 = vsel %vm128, %v119, 0
    %v160 = vsel %vm128, %v120, 0
    %v163 = vsel %vm128, %v121, 0
    %v166 = vsel %vm128, %v122, 0
    %v169 = vsel %vm128, %v123, 0
    %v172 = vsel %vm128, %v124, 0
    %v175 = vsel %vm128, %v125, 0
    %177 = vmatprep.subr.mxu0 0.0
    %178 = vmatpush1.msra.mxu0 %v126
    %179 = vmatprep.subr.mxu0 0.0
    %180 = vmatpush1.msra.mxu0 %v127
    %181 = vmatprep.subr.mxu0 0.0
    %182 = vmatpush1.msra.mxu0 0.0
    %183 = vmatprep.subr.mxu0 0.0
    %184 = vmatpush1.msra.mxu0 0.0
    %185 = vmatprep.subr.mxu0 0.0
    %186 = vmatpush1.msra.mxu0 0.0
    %187 = vmatprep.subr.mxu0 0.0
    %188 = vmatpush1.msra.mxu0 0.0
    %189 = vmatprep.subr.mxu0 0.0
    %190 = vmatpush1.msra.mxu0 0.0
    %191 = vmatprep.subr.mxu0 0.0
    %192 = vmatpush1.msra.mxu0 0.0
    %193 = vmatprep.subr.mxu0 0.0
    %194 = vmatpush1.msra.mxu0 0.0
    %195 = vmatprep.subr.mxu0 0.0
    %196 = vmatpush1.msra.mxu0 0.0
    %197 = vmatprep.subr.mxu0 0.0
    %198 = vmatpush1.msra.mxu0 0.0
    %199 = vmatprep.subr.mxu0 0.0
    %200 = vmatpush1.msra.mxu0 0.0
    %201 = vmatprep.subr.mxu0 0.0
    %202 = vmatpush1.msra.mxu0 0.0
    %203 = vmatprep.subr.mxu0 0.0
    %204 = vmatpush1.msra.mxu0 0.0
    %205 = vmatprep.subr.mxu0 0.0
    %206 = vmatpush1.msra.mxu0 0.0
    %207 = vmatprep.subr.mxu0 0.0
    %208 = vmatpush1.msra.mxu0 0.0
    %209 = vmatprep.subr.mxu0 0.0
    %210 = vmatpush1.msra.mxu0 0.0
    %211 = vmatprep.subr.mxu0 0.0
    %212 = vmatpush1.msra.mxu0 0.0
    %213 = vmatprep.subr.mxu0 0.0
    %214 = vmatpush1.msra.mxu0 0.0
    %215 = vmatprep.subr.mxu0 0.0
    %216 = vmatpush1.msra.mxu0 0.0
    %217 = vmatprep.subr.mxu0 0.0
    %218 = vmatpush1.msra.mxu0 0.0
    %219 = vmatprep.subr.mxu0 0.0
    %220 = vmatpush1.msra.mxu0 0.0
    %221 = vmatprep.subr.mxu0 0.0
    %222 = vmatpush1.msra.mxu0 0.0
    %223 = vmatprep.subr.mxu0 0.0
    %224 = vmatpush1.msra.mxu0 0.0
    %225 = vmatprep.subr.mxu0 0.0
    %226 = vmatpush1.msra.mxu0 0.0
    %227 = vmatprep.subr.mxu0 0.0
    %228 = vmatpush1.msra.mxu0 0.0
    %229 = vmatprep.subr.mxu0 0.0
    %230 = vmatpush1.msra.mxu0 0.0
    %231 = vmatprep.subr.mxu0 0.0
    %232 = vmatpush1.msra.mxu0 0.0
    %233 = vmatprep.subr.mxu0 0.0
    %234 = vmatpush1.msra.mxu0 0.0
    %235 = vmatprep.subr.mxu0 0.0
    %236 = vmatpush1.msra.mxu0 0.0
    %237 = vmatprep.subr.mxu0 0.0
    %238 = vmatpush1.msra.mxu0 0.0
    %239 = vmatprep.subr.mxu0 0.0
    %240 = vmatpush1.msra.mxu0 0.0
    %241 = vmatprep.mubr.f32.mxu0 0.0
    %242 = vmatmul.mubr.f32.gmra.mrb[0].mxu0 %v130
    %v243 = vpop.f32.mrb[0].mxu0
    %v244 = vadd.f32 0.0, %v243
    %v245 = vpop.f32.mrb[0].mxu0
    %246 = vmatprep.mubr.f32.mxu0 0.0
    %247 = vmatmul.mubr.f32.gmra.mrb[0].mxu0 %v133
    %v248 = vpop.f32.mrb[0].mxu0
    %v249 = vadd.f32 0.0, %v248
    %v250 = vpop.f32.mrb[0].mxu0
    %251 = vmatprep.mubr.f32.mxu0 0.0
    %252 = vmatmul.mubr.f32.gmra.mrb[0].mxu0 %v136
    %v253 = vpop.f32.mrb[0].mxu0
    %v254 = vadd.f32 0.0, %v253
    %v255 = vpop.f32.mrb[0].mxu0
    %256 = vmatprep.mubr.f32.mxu0 0.0
    %257 = vmatmul.mubr.f32.gmra.mrb[0].mxu0 %v139
    %v258 = vpop.f32.mrb[0].mxu0
    %v259 = vadd.f32 0.0, %v258
    %v260 = vpop.f32.mrb[0].mxu0
    %261 = vmatprep.mubr.f32.mxu0 0.0
    %262 = vmatmul.mubr.f32.gmra.mrb[0].mxu0 %v142
    %v263 = vpop.f32.mrb[0].mxu0
    %v264 = vadd.f32 0.0, %v263
    %v265 = vpop.f32.mrb[0].mxu0
    %266 = vmatprep.mubr.f32.mxu0 0.0
    %267 = vmatmul.mubr.f32.gmra.mrb[0].mxu0 %v145
    %v268 = vpop.f32.mrb[0].mxu0
    %v269 = vadd.f32 0.0, %v268
    %v270 = vpop.f32.mrb[0].mxu0
    %271 = vmatprep.mubr.f32.mxu0 0.0
    %272 = vmatmul.mubr.f32.gmra.mrb[0].mxu0 %v148
    %v273 = vpop.f32.mrb[0].mxu0
    %v274 = vadd.f32 0.0, %v273
    %v275 = vpop.f32.mrb[0].mxu0
    %276 = vmatprep.mubr.f32.mxu0 0.0
    %277 = vmatmul.mubr.f32.gmra.mrb[0].mxu0 %v151
    %v278 = vpop.f32.mrb[0].mxu0
    %v279 = vadd.f32 0.0, %v278
    %v280 = vpop.f32.mrb[0].mxu0
    %281 = vmatprep.mubr.f32.mxu0 0.0
    %282 = vmatmul.mubr.f32.gmra.mrb[0].mxu0 %v154
    %v283 = vpop.f32.mrb[0].mxu0
    %v284 = vadd.f32 0.0, %v283
    %v285 = vpop.f32.mrb[0].mxu0
    %286 = vmatprep.mubr.f32.mxu0 0.0
    %287 = vmatmul.mubr.f32.gmra.mrb[0].mxu0 %v157
    %v288 = vpop.f32.mrb[0].mxu0
    %v289 = vadd.f32 0.0, %v288
    %v290 = vpop.f32.mrb[0].mxu0
    %291 = vmatprep.mubr.f32.mxu0 0.0
    %292 = vmatmul.mubr.f32.gmra.mrb[0].mxu0 %v160
    %v293 = vpop.f32.mrb[0].mxu0
    %v294 = vadd.f32 0.0, %v293
    %v295 = vpop.f32.mrb[0].mxu0
    %296 = vmatprep.mubr.f32.mxu0 0.0
    %297 = vmatmul.mubr.f32.gmra.mrb[0].mxu0 %v163
    %v298 = vpop.f32.mrb[0].mxu0
    %v299 = vadd.f32 0.0, %v298
    %v300 = vpop.f32.mrb[0].mxu0
    %301 = vmatprep.mubr.f32.mxu0 0.0
    %302 = vmatmul.mubr.f32.gmra.mrb[0].mxu0 %v166
    %v303 = vpop.f32.mrb[0].mxu0
    %v304 = vadd.f32 0.0, %v303
    %v305 = vpop.f32.mrb[0].mxu0
    %306 = vmatprep.mubr.f32.mxu0 0.0
    %307 = vmatmul.mubr.f32.gmra.mrb[0].mxu0 %v169
    %v308 = vpop.f32.mrb[0].mxu0
    %v309 = vadd.f32 0.0, %v308
    %v310 = vpop.f32.mrb[0].mxu0
    %311 = vmatprep.mubr.f32.mxu0 0.0
    %312 = vmatmul.mubr.f32.gmra.mrb[0].mxu0 %v172
    %v313 = vpop.f32.mrb[0].mxu0
    %v314 = vadd.f32 0.0, %v313
    %v315 = vpop.f32.mrb[0].mxu0
    %316 = vmatprep.mubr.f32.mxu0 0.0
    %317 = vmatmul.mubr.f32.gmra.mrb[0].mxu0 %v175
    %v318 = vpop.f32.mrb[0].mxu0
    %v319 = vadd.f32 0.0, %v318
    %v320 = vpop.f32.mrb[0].mxu0
    %321 = vdwg.mxu0
    %322 = vst [vmem:[#allocation2] sm:$0xff] %v244
    %323 = vst [vmem:[#allocation2 + $0x8] sm:$0xff] %v249
    %324 = vst [vmem:[#allocation2 + $0x10] sm:$0xff] %v254
    %325 = vst [vmem:[#allocation2 + $0x18] sm:$0xff] %v259
    %326 = vst [vmem:[#allocation2 + $0x20] sm:$0xff] %v264
    %327 = vst [vmem:[#allocation2 + $0x28] sm:$0xff] %v269
    %328 = vst [vmem:[#allocation2 + $0x30] sm:$0xff] %v274
    %329 = vst [vmem:[#allocation2 + $0x38] sm:$0xff] %v279
    %330 = vst [vmem:[#allocation2 + $0x40] sm:$0xff] %v284
    %331 = vst [vmem:[#allocation2 + $0x48] sm:$0xff] %v289
    %332 = vst [vmem:[#allocation2 + $0x50] sm:$0xff] %v294
    %333 = vst [vmem:[#allocation2 + $0x58] sm:$0xff] %v299
    %334 = vst [vmem:[#allocation2 + $0x60] sm:$0xff] %v304
    %335 = vst [vmem:[#allocation2 + $0x68] sm:$0xff] %v309
    %336 = vst [vmem:[#allocation2 + $0x70] sm:$0xff] %v314
    %337 = vst [vmem:[#allocation2 + $0x78] sm:$0xff] %v319
    // Predicated region
    $region10: #{tpu_custom_call.1} parent=1 // pred_check
      _
    $region11: #{tpu_custom_call.1} parent=1 // pred_check_branch
      %339 = sbr.rel (0) target = $region13
    $region12: #{tpu_custom_call.1} parent=1 // pred_region
      %s341 = ssub.s32 2048, 2048
      %342 = vsyncadd [#allocation3], %s341
      %s343 = sshll.u32 [#allocation2], 4
      %s344 = int_to_ptr.vmem [resolvable:$true] %s343
      %349 = dma.vmem_to_hbm [thread:$0]  %s344, 2048, %s2, [#allocation3], 128, 128, 8
    $region13: #{tpu_custom_call.1} parent=1 // pred_fallthru
      _
    // Predicated region
    $region14: #{tpu_custom_call.1} parent=1 // pred_check
      _
    $region15: #{tpu_custom_call.1} parent=1 // pred_check_branch
      %351 = sbr.rel (0) target = $region17
    $region16: #{tpu_custom_call.1} parent=1 // pred_region
      %352 = dma.done [#allocation3], 2048
    $region17: #{tpu_custom_call.1} parent=1 // pred_fallthru
      _
    %353 = vsyncpa [#allocation3], 1

</llo_original>
